<compile_context>
chip_gen: v5e
topology: v5e:2x2
jax: 0.10.0
libtpu: 0.0.40
codegen_flags: <defaults>
</compile_context>

<pallas_src>
import functools

import jax
import jax.numpy as jnp
from jax.experimental import pallas as pl
from jax.experimental.pallas import tpu as pltpu

_SQRT_HALF = 0.7071067811865476
_SQRT_2_OVER_PI = 0.7978845608028654


def _erf_f32(x):
    """erf via Abramowitz & Stegun 7.1.26 (|err| <= 1.5e-7), exp/mul/add/where only."""
    p = 0.3275911
    a1, a2, a3, a4, a5 = (0.254829592, -0.284496736, 1.421413741,
                          -1.453152027, 1.061405429)
    ax = jnp.abs(x)
    t = 1.0 / (1.0 + p * ax)
    poly = ((((a5 * t + a4) * t + a3) * t + a2) * t + a1) * t
    y = 1.0 - poly * jnp.exp(-ax * ax)
    return jnp.where(x >= 0, y, -y)


def _gelu_f32(h, mode):
    if mode == "tanh":
        # tanh approximation — routes to the EUP; use when erf parity not required.
        return 0.5 * h * (1.0 + jnp.tanh(_SQRT_2_OVER_PI * (h + 0.044715 * h * h * h)))
    return 0.5 * h * (1.0 + _erf_f32(h * _SQRT_HALF))


def _ffn_kernel(x_ref, gamma_ref, beta_ref, w1_ref, b1_ref, w2_ref, b2_ref,
                o_ref, xn_ref, acc_ref, *, eps, gelu_mode):
    """Grid step (i, h): row tile i, hidden-dim tile h."""
    h_idx = pl.program_id(1)

    @pl.when(h_idx == 0)
    def _():
        # LayerNorm once per row tile, f32 statistics (fused one-pass E[x], E[x^2]).
        x = x_ref[...].astype(jnp.float32)                      # (block_m, D)
        gamma = gamma_ref[...].astype(jnp.float32)              # (1, D)
        beta = beta_ref[...].astype(jnp.float32)                # (1, D)
        mean = jnp.mean(x, axis=-1, keepdims=True)
        mean_sq = jnp.mean(x * x, axis=-1, keepdims=True)
        var = mean_sq - mean * mean
        xn = (x - mean) * jax.lax.rsqrt(var + eps) * gamma + beta
        xn_ref[...] = xn.astype(xn_ref.dtype)                   # matmul operand dtype
        acc_ref[...] = jnp.zeros_like(acc_ref)

    # Linear 1 for this hidden tile: (block_m, D) @ (D, block_h) — MXU, f32 acc.
    hid = jnp.dot(xn_ref[...], w1_ref[...], preferred_element_type=jnp.float32)
    hid = hid + b1_ref[...].astype(jnp.float32)                 # (1, block_h) broadcast

    # GELU (exact erf by default).  Dropout(p=0.0) -> identity.
    # TODO(synk): nonzero-p training dropout would use pltpu.prng_seed/prng_random_bits.
    g = _gelu_f32(hid, gelu_mode)

    # Linear 2 partial contribution, accumulated across hidden tiles.
    acc_ref[...] += jnp.dot(g.astype(w2_ref.dtype), w2_ref[...],
                            preferred_element_type=jnp.float32)

    @pl.when(h_idx == pl.num_programs(1) - 1)
    def _():
        out = acc_ref[...] + b2_ref[...].astype(jnp.float32)
        o_ref[...] = out.astype(o_ref.dtype)


def _round_up(x, m):
    return ((x + m - 1) // m) * m


def _vmem_ceiling_bytes():
    try:
        cap = int(pltpu.get_tpu_info().vmem_capacity_bytes)
    except Exception:
        cap = 64 * 1024 * 1024  # conservative (v7x per-core VMEM)
    return int(cap * 0.85)


def feedforward_forward(x, gamma, beta, w1, b1, w2, b2, *, eps=1e-5,
                        compute_dtype=jnp.bfloat16, gelu_mode="erf",
                        block_m=None, block_h=None, vmem_limit_bytes=None):
    """FeedForward forward pass as a Pallas TPU kernel.

    x: (B, N, D);  w1: (D, H);  b1: (H,);  w2: (H, D);  b2: (D,);  gamma/beta: (D,).
    compute_dtype: matmul-operand dtype (default bf16; MXU-native on all TPU
    generations).  LayerNorm stats / GELU / bias adds / accumulation stay f32.
    Pass compute_dtype=jnp.float32 for the full-precision path.
    """
    B, N, D = x.shape
    H = w1.shape[1]
    M = B * N
    out_dtype = x.dtype

    # --- tile sizes (v7x-safe caps: block_m <= 256, block_h <= 512) ---------
    if block_m is None:
        block_m = min(256, _round_up(M, 8))
    block_m = max(8, _round_up(block_m, 8))
    if block_h is None:
        block_h = H if H <= 512 else 512
    if block_h < H:
        block_h = _round_up(block_h, 128)   # lane alignment for partial H tiles

    M_pad = _round_up(M, block_m)
    H_pad = _round_up(H, block_h)

    # --- operand dtypes ------------------------------------------------------
    w1c, w2c = w1, w2
    if compute_dtype is not None:
        w1c = w1c.astype(compute_dtype)
        w2c = w2c.astype(compute_dtype)
    matmul_dtype = w1c.dtype

    x2 = x.reshape(M, D)
    if compute_dtype is not None and jnp.dtype(compute_dtype).itemsize < x2.dtype.itemsize:
        x2 = x2.astype(compute_dtype)       # halves activation DMA

    # --- padding (rows to block_m, hidden units to block_h) ------------------
    # Zero-padded hidden units contribute exactly 0 (w2 pad rows are zero);
    # zero-padded rows are sliced off after the call.
    if M_pad != M:
        x2 = jnp.pad(x2, ((0, M_pad - M), (0, 0)))
    b1p = b1
    if H_pad != H:
        w1c = jnp.pad(w1c, ((0, 0), (0, H_pad - H)))
        b1p = jnp.pad(b1, (0, H_pad - H))
        w2c = jnp.pad(w2c, ((0, H_pad - H), (0, 0)))

    gamma2 = gamma.reshape(1, D)
    beta2 = beta.reshape(1, D)
    b1_2 = b1p.reshape(1, H_pad)
    b2_2 = b2.reshape(1, D)

    grid = (M_pad // block_m, H_pad // block_h)

    # --- VMEM budget ----------------------------------------------------------
    def _nbytes(dt):
        return jnp.dtype(dt).itemsize

    w_bytes = _nbytes(matmul_dtype)
    est = (2 * block_m * D * _nbytes(x2.dtype)          # x tile (double buffered)
           + 2 * block_m * D * _nbytes(out_dtype)       # out tile
           + 2 * D * block_h * w_bytes                  # w1 tile
           + 2 * block_h * D * w_bytes                  # w2 tile
           + 2 * 8 * block_h * 4                        # b1 tile (sublane padded)
           + 6 * 8 * max(D, 128) * 4                    # gamma / beta / b2
           + block_m * D * (w_bytes + 4)                # xn + acc scratch
           + 6 * block_m * block_h * 4)                 # hidden/GELU temporaries headroom
    if vmem_limit_bytes is None:
        vmem_limit_bytes = int(min(_vmem_ceiling_bytes(),
                                   max(2 * est, 32 * 1024 * 1024)))

    # --- cost estimate --------------------------------------------------------
    n_m = M_pad // block_m
    flops = 4 * M_pad * D * H_pad                       # two matmuls
    transcendentals = M_pad * H_pad                     # exp (or tanh) in GELU
    bytes_accessed = int(x2.size * _nbytes(x2.dtype)
                         + M_pad * D * _nbytes(out_dtype)
                         + n_m * (2 * D * H_pad * w_bytes + H_pad * 4)
                         + 3 * D * 4)
    cost = pl.CostEstimate(flops=flops, transcendentals=transcendentals,
                           bytes_accessed=bytes_accessed)

    grid_spec = pltpu.PrefetchScalarGridSpec(
        num_scalar_prefetch=0,
        grid=grid,
        in_specs=[
            pl.BlockSpec((block_m, D), lambda i, h: (i, 0)),   # x rows (re-used across h)
            pl.BlockSpec((1, D), lambda i, h: (0, 0)),         # gamma
            pl.BlockSpec((1, D), lambda i, h: (0, 0)),         # beta
            pl.BlockSpec((D, block_h), lambda i, h: (0, h)),   # w1 hidden tile (streamed)
            pl.BlockSpec((1, block_h), lambda i, h: (0, h)),   # b1 hidden tile
            pl.BlockSpec((block_h, D), lambda i, h: (h, 0)),   # w2 hidden tile (streamed)
            pl.BlockSpec((1, D), lambda i, h: (0, 0)),         # b2
        ],
        out_specs=pl.BlockSpec((block_m, D), lambda i, h: (i, 0)),
        scratch_shapes=[
            pltpu.VMEM((block_m, D), matmul_dtype),            # cached LayerNorm output
            pltpu.VMEM((block_m, D), jnp.float32),             # output accumulator
        ],
    )

    out2 = pl.pallas_call(
        functools.partial(_ffn_kernel, eps=eps, gelu_mode=gelu_mode),
        out_shape=jax.ShapeDtypeStruct((M_pad, D), out_dtype),
        grid_spec=grid_spec,
        compiler_params=pltpu.CompilerParams(
            dimension_semantics=("parallel", "arbitrary"),
            vmem_limit_bytes=vmem_limit_bytes),
        cost_estimate=cost,
    )(x2, gamma2, beta2, w1c, b1_2, w2c, b2_2)

    return out2[:M].reshape(B, N, D)


def feedforward_reference(x, gamma, beta, w1, b1, w2, b2, eps=1e-5):
    """Pure-JAX reference (exact erf GELU), for correctness checking."""
    mean = jnp.mean(x, axis=-1, keepdims=True)
    var = jnp.mean((x - mean) ** 2, axis=-1, keepdims=True)
    xn = (x - mean) * jax.lax.rsqrt(var + eps) * gamma + beta
    h = xn @ w1 + b1
    h = 0.5 * h * (1.0 + jax.lax.erf(h * _SQRT_HALF))
    return h @ w2 + b2


def _make_inputs(B, N, D, H, key):
    kx, k1, kb1, k2, kb2 = jax.random.split(key, 5)
    x = jax.random.normal(kx, (B, N, D), dtype=jnp.float32)
    gamma = jnp.ones((D,), dtype=jnp.float32)
    beta = jnp.zeros((D,), dtype=jnp.float32)
    w1 = 0.05 * jax.random.normal(k1, (D, H), dtype=jnp.float32)
    b1 = 0.01 * jax.random.normal(kb1, (H,), dtype=jnp.float32)
    w2 = 0.05 * jax.random.normal(k2, (H, D), dtype=jnp.float32)
    b2 = 0.01 * jax.random.normal(kb2, (D,), dtype=jnp.float32)
    return x, gamma, beta, w1, b1, w2, b2


if __name__ == "__main__":
    key = jax.random.PRNGKey(0)
    k_small, k_big = jax.random.split(key, 2)

    # --- small config: batch=2, seq=8, dim=32, hidden=64 (single tile) -------
    B, N, D, H = 2, 8, 32, 64
    x, gamma, beta, w1, b1, w2, b2 = _make_inputs(B, N, D, H, k_small)
    ref = feedforward_reference(x, gamma, beta, w1, b1, w2, b2)

    # Full-precision matmul-operand path (tight check).
    out_f32 = jax.block_until_ready(
        feedforward_forward(x, gamma, beta, w1, b1, w2, b2,
                            compute_dtype=jnp.float32))
    assert out_f32.shape == (B, N, D)
    assert jnp.allclose(out_f32, ref, atol=1e-4, rtol=1e-4), "f32 mismatch vs reference"

    # Default bf16 matmul-operand path (f32 stats & accumulation).
    out_bf16 = jax.block_until_ready(
        feedforward_forward(x, gamma, beta, w1, b1, w2, b2))
    assert out_bf16.shape == (B, N, D)
    assert jnp.allclose(out_bf16, ref, atol=2e-2, rtol=2e-2), "bf16 mismatch vs reference"

    # --- config exercising row padding + H-streaming (2 hidden tiles + pad) --
    B2, N2, D2, H2 = 2, 5, 128, 640   # M=10 -> padded to 16; H=640 -> 2 tiles of 512
    x2_, g2_, be2_, w1_, b1_, w2_, b2_ = _make_inputs(B2, N2, D2, H2, k_big)
    ref2 = feedforward_reference(x2_, g2_, be2_, w1_, b1_, w2_, b2_)
    out2_ = jax.block_until_ready(
        feedforward_forward(x2_, g2_, be2_, w1_, b1_, w2_, b2_,
                            compute_dtype=jnp.float32))
    assert out2_.shape == (B2, N2, D2)
    assert jnp.allclose(out2_, ref2, atol=1e-3, rtol=1e-3), "H-streaming mismatch vs reference"

    print("KERNEL_OK")
</pallas_src>

<mosaic_0001>
module attributes {stable_mosaic.version = 11 : i64} {
  func.func @_ffn_kernel(%arg0: i32, %arg1: i32, %arg2: memref<16x32xf32, #tpu.memory_space<vmem>>, %arg3: memref<1x32xf32, #tpu.memory_space<vmem>>, %arg4: memref<1x32xf32, #tpu.memory_space<vmem>>, %arg5: memref<32x64xf32, #tpu.memory_space<vmem>>, %arg6: memref<1x64xf32, #tpu.memory_space<vmem>>, %arg7: memref<64x32xf32, #tpu.memory_space<vmem>>, %arg8: memref<1x32xf32, #tpu.memory_space<vmem>>, %arg9: memref<16x32xf32, #tpu.memory_space<vmem>>, %arg10: memref<16x32xf32, #tpu.memory_space<vmem>>, %arg11: memref<16x32xf32, #tpu.memory_space<vmem>>) attributes {dimension_semantics = [#tpu.dimension_semantics<parallel>, #tpu.dimension_semantics<arbitrary>], iteration_bounds = array<i64: 1, 1>, scalar_prefetch = 0 : i64, scratch_operands = 2 : i64, tpu.core_type = #tpu.core_type<tc>, window_params = [{transform_indices = @transform_0, window_bounds = array<i64: 16, 32>}, {pipeline_mode = #tpu.pipeline_mode<synchronous>, transform_indices = @transform_1, window_bounds = array<i64: 1, 32>}, {pipeline_mode = #tpu.pipeline_mode<synchronous>, transform_indices = @transform_2, window_bounds = array<i64: 1, 32>}, {transform_indices = @transform_3, window_bounds = array<i64: 32, 64>}, {transform_indices = @transform_4, window_bounds = array<i64: 1, 64>}, {transform_indices = @transform_5, window_bounds = array<i64: 64, 32>}, {pipeline_mode = #tpu.pipeline_mode<synchronous>, transform_indices = @transform_6, window_bounds = array<i64: 1, 32>}, {transform_indices = @transform_7, window_bounds = array<i64: 16, 32>}]} {
    %c0_i32 = arith.constant 0 : i32
    %0 = arith.cmpi eq, %arg1, %c0_i32 : i32
    %1 = arith.extui %0 : i1 to i32
    %c0_i32_0 = arith.constant 0 : i32
    %2 = arith.cmpi ne, %1, %c0_i32_0 : i32
    scf.if %2 {
      %c0_30 = arith.constant 0 : index
      %c0_31 = arith.constant 0 : index
      %57 = vector.load %arg2[%c0_30, %c0_31] : memref<16x32xf32, #tpu.memory_space<vmem>>, vector<16x32xf32>
      %c0_32 = arith.constant 0 : index
      %c0_33 = arith.constant 0 : index
      %58 = vector.load %arg3[%c0_32, %c0_33] : memref<1x32xf32, #tpu.memory_space<vmem>>, vector<1x32xf32>
      %c0_34 = arith.constant 0 : index
      %c0_35 = arith.constant 0 : index
      %59 = vector.load %arg4[%c0_34, %c0_35] : memref<1x32xf32, #tpu.memory_space<vmem>>, vector<1x32xf32>
      %cst_36 = arith.constant dense<0.000000e+00> : vector<16xf32>
      %60 = vector.multi_reduction <add>, %57, %cst_36 [1] : vector<16x32xf32> to vector<16xf32>
      %61 = vector.shape_cast %60 : vector<16xf32> to vector<16x1xf32>
      %cst_37 = arith.constant 3.200000e+01 : f32
      %62 = vector.broadcast %cst_37 : f32 to vector<16x1xf32>
      %63 = arith.divf %61, %62 : vector<16x1xf32>
      %64 = arith.mulf %57, %57 : vector<16x32xf32>
      %cst_38 = arith.constant dense<0.000000e+00> : vector<16xf32>
      %65 = vector.multi_reduction <add>, %64, %cst_38 [1] : vector<16x32xf32> to vector<16xf32>
      %66 = vector.shape_cast %65 : vector<16xf32> to vector<16x1xf32>
      %cst_39 = arith.constant 3.200000e+01 : f32
      %67 = vector.broadcast %cst_39 : f32 to vector<16x1xf32>
      %68 = arith.divf %66, %67 : vector<16x1xf32>
      %69 = arith.mulf %63, %63 : vector<16x1xf32>
      %70 = arith.subf %68, %69 : vector<16x1xf32>
      %71 = vector.broadcast %63 : vector<16x1xf32> to vector<16x32xf32>
      %72 = arith.subf %57, %71 : vector<16x32xf32>
      %cst_40 = arith.constant 9.99999974E-6 : f32
      %73 = vector.broadcast %cst_40 : f32 to vector<16x1xf32>
      %74 = arith.addf %70, %73 : vector<16x1xf32>
      %75 = math.rsqrt %74 : vector<16x1xf32>
      %76 = vector.broadcast %75 : vector<16x1xf32> to vector<16x32xf32>
      %77 = arith.mulf %72, %76 : vector<16x32xf32>
      %78 = vector.broadcast %58 : vector<1x32xf32> to vector<16x32xf32>
      %79 = arith.mulf %77, %78 : vector<16x32xf32>
      %80 = vector.broadcast %59 : vector<1x32xf32> to vector<16x32xf32>
      %81 = arith.addf %79, %80 : vector<16x32xf32>
      %c0_41 = arith.constant 0 : index
      %c0_42 = arith.constant 0 : index
      %82 = vector.load %arg10[%c0_41, %c0_42] : memref<16x32xf32, #tpu.memory_space<vmem>>, vector<16x32xf32>
      tpu.vector_store %arg10[%c0_41, %c0_42], %81 {strides = array<i32>} : memref<16x32xf32, #tpu.memory_space<vmem>>, vector<16x32xf32>,
      %cst_43 = arith.constant 0.000000e+00 : f32
      %83 = vector.broadcast %cst_43 : f32 to vector<16x32xf32>
      %c0_44 = arith.constant 0 : index
      %c0_45 = arith.constant 0 : index
      %84 = vector.load %arg11[%c0_44, %c0_45] : memref<16x32xf32, #tpu.memory_space<vmem>>, vector<16x32xf32>
      tpu.vector_store %arg11[%c0_44, %c0_45], %83 {strides = array<i32>} : memref<16x32xf32, #tpu.memory_space<vmem>>, vector<16x32xf32>,
    } else {
    }
    %c0 = arith.constant 0 : index
    %c0_1 = arith.constant 0 : index
    %3 = vector.load %arg10[%c0, %c0_1] : memref<16x32xf32, #tpu.memory_space<vmem>>, vector<16x32xf32>
    %c0_2 = arith.constant 0 : index
    %c0_3 = arith.constant 0 : index
    %4 = vector.load %arg5[%c0_2, %c0_3] : memref<32x64xf32, #tpu.memory_space<vmem>>, vector<32x64xf32>
    %cst = arith.constant dense<0.000000e+00> : vector<16x64xf32>
    %5 = tpu.matmul %3, %4, %cst {dimension_numbers = #tpu.dot_dimension_numbers<[1], [0], [0], [1], [0, 0, 1, 1], [], []>} : vector<16x32xf32>, vector<32x64xf32>, vector<16x64xf32> -> vector<16x64xf32>
    %c0_4 = arith.constant 0 : index
    %c0_5 = arith.constant 0 : index
    %6 = vector.load %arg6[%c0_4, %c0_5] : memref<1x64xf32, #tpu.memory_space<vmem>>, vector<1x64xf32>
    %7 = vector.broadcast %6 : vector<1x64xf32> to vector<16x64xf32>
    %8 = arith.addf %5, %7 : vector<16x64xf32>
    %cst_6 = arith.constant 5.000000e-01 : f32
    %9 = vector.broadcast %cst_6 : f32 to vector<16x64xf32>
    %10 = arith.mulf %9, %8 : vector<16x64xf32>
    %cst_7 = arith.constant 0.707106769 : f32
    %11 = vector.broadcast %cst_7 : f32 to vector<16x64xf32>
    %12 = arith.mulf %8, %11 : vector<16x64xf32>
    %13 = math.absf %12 : vector<16x64xf32>
    %cst_8 = arith.constant 0.327591091 : f32
    %14 = vector.broadcast %cst_8 : f32 to vector<16x64xf32>
    %15 = arith.mulf %14, %13 : vector<16x64xf32>
    %cst_9 = arith.constant 1.000000e+00 : f32
    %16 = vector.broadcast %cst_9 : f32 to vector<16x64xf32>
    %17 = arith.addf %16, %15 : vector<16x64xf32>
    %cst_10 = arith.constant 1.000000e+00 : f32
    %18 = vector.broadcast %cst_10 : f32 to vector<16x64xf32>
    %19 = arith.divf %18, %17 : vector<16x64xf32>
    %cst_11 = arith.constant 1.06140542 : f32
    %20 = vector.broadcast %cst_11 : f32 to vector<16x64xf32>
    %21 = arith.mulf %20, %19 : vector<16x64xf32>
    %cst_12 = arith.constant -1.45315206 : f32
    %22 = vector.broadcast %cst_12 : f32 to vector<16x64xf32>
    %23 = arith.addf %21, %22 : vector<16x64xf32>
    %24 = arith.mulf %23, %19 : vector<16x64xf32>
    %cst_13 = arith.constant 1.42141378 : f32
    %25 = vector.broadcast %cst_13 : f32 to vector<16x64xf32>
    %26 = arith.addf %24, %25 : vector<16x64xf32>
    %27 = arith.mulf %26, %19 : vector<16x64xf32>
    %cst_14 = arith.constant -0.284496725 : f32
    %28 = vector.broadcast %cst_14 : f32 to vector<16x64xf32>
    %29 = arith.addf %27, %28 : vector<16x64xf32>
    %30 = arith.mulf %29, %19 : vector<16x64xf32>
    %cst_15 = arith.constant 0.254829586 : f32
    %31 = vector.broadcast %cst_15 : f32 to vector<16x64xf32>
    %32 = arith.addf %30, %31 : vector<16x64xf32>
    %33 = arith.mulf %32, %19 : vector<16x64xf32>
    %cst_16 = arith.constant 0.000000e+00 : f32
    %34 = vector.broadcast %cst_16 : f32 to vector<16x64xf32>
    %35 = arith.subf %34, %13 : vector<16x64xf32>
    %36 = arith.mulf %35, %13 : vector<16x64xf32>
    %37 = math.exp %36 : vector<16x64xf32>
    %38 = arith.mulf %33, %37 : vector<16x64xf32>
    %cst_17 = arith.constant 1.000000e+00 : f32
    %39 = vector.broadcast %cst_17 : f32 to vector<16x64xf32>
    %40 = arith.subf %39, %38 : vector<16x64xf32>
    %cst_18 = arith.constant 0.000000e+00 : f32
    %41 = vector.broadcast %cst_18 : f32 to vector<16x64xf32>
    %42 = arith.cmpf oge, %12, %41 : vector<16x64xf32>
    %cst_19 = arith.constant 0.000000e+00 : f32
    %43 = vector.broadcast %cst_19 : f32 to vector<16x64xf32>
    %44 = arith.subf %43, %40 : vector<16x64xf32>
    %45 = arith.select %42, %40, %44 : vector<16x64xi1>, vector<16x64xf32>
    %cst_20 = arith.constant 1.000000e+00 : f32
    %46 = vector.broadcast %cst_20 : f32 to vector<16x64xf32>
    %47 = arith.addf %46, %45 : vector<16x64xf32>
    %48 = arith.mulf %10, %47 : vector<16x64xf32>
    %c0_21 = arith.constant 0 : index
    %c0_22 = arith.constant 0 : index
    %49 = vector.load %arg11[%c0_21, %c0_22] : memref<16x32xf32, #tpu.memory_space<vmem>>, vector<16x32xf32>
    %c0_23 = arith.constant 0 : index
    %c0_24 = arith.constant 0 : index
    %50 = vector.load %arg7[%c0_23, %c0_24] : memref<64x32xf32, #tpu.memory_space<vmem>>, vector<64x32xf32>
    %cst_25 = arith.constant dense<0.000000e+00> : vector<16x32xf32>
    %51 = tpu.matmul %48, %50, %cst_25 {dimension_numbers = #tpu.dot_dimension_numbers<[1], [0], [0], [1], [0, 0, 1, 1], [], []>} : vector<16x64xf32>, vector<64x32xf32>, vector<16x32xf32> -> vector<16x32xf32>
    %52 = arith.addf %49, %51 : vector<16x32xf32>
    %c0_26 = arith.constant 0 : index
    %c0_27 = arith.constant 0 : index
    %53 = vector.load %arg11[%c0_26, %c0_27] : memref<16x32xf32, #tpu.memory_space<vmem>>, vector<16x32xf32>
    tpu.vector_store %arg11[%c0_26, %c0_27], %52 {strides = array<i32>} : memref<16x32xf32, #tpu.memory_space<vmem>>, vector<16x32xf32>,
    %c0_i32_28 = arith.constant 0 : i32
    %54 = arith.cmpi eq, %arg1, %c0_i32_28 : i32
    %55 = arith.extui %54 : i1 to i32
    %c0_i32_29 = arith.constant 0 : i32
    %56 = arith.cmpi ne, %55, %c0_i32_29 : i32
    scf.if %56 {
      %c0_30 = arith.constant 0 : index
      %c0_31 = arith.constant 0 : index
      %57 = vector.load %arg11[%c0_30, %c0_31] : memref<16x32xf32, #tpu.memory_space<vmem>>, vector<16x32xf32>
      %c0_32 = arith.constant 0 : index
      %c0_33 = arith.constant 0 : index
      %58 = vector.load %arg8[%c0_32, %c0_33] : memref<1x32xf32, #tpu.memory_space<vmem>>, vector<1x32xf32>
      %59 = vector.broadcast %58 : vector<1x32xf32> to vector<16x32xf32>
      %60 = arith.addf %57, %59 : vector<16x32xf32>
      %c0_34 = arith.constant 0 : index
      %c0_35 = arith.constant 0 : index
      %61 = vector.load %arg9[%c0_34, %c0_35] : memref<16x32xf32, #tpu.memory_space<vmem>>, vector<16x32xf32>
      tpu.vector_store %arg9[%c0_34, %c0_35], %60 {strides = array<i32>} : memref<16x32xf32, #tpu.memory_space<vmem>>, vector<16x32xf32>,
    } else {
    }
    return
  }
  func.func @transform_0(%arg0: i32, %arg1: i32) -> (i32, i32) {
    %c0_i32 = arith.constant 0 : i32
    %c0_i32_0 = arith.constant 0 : i32
    return %arg0, %c0_i32 : i32, i32
  }
  func.func @transform_1(%arg0: i32, %arg1: i32) -> (i32, i32) {
    %c0_i32 = arith.constant 0 : i32
    %c0_i32_0 = arith.constant 0 : i32
    %c0_i32_1 = arith.constant 0 : i32
    return %c0_i32, %c0_i32_0 : i32, i32
  }
  func.func @transform_2(%arg0: i32, %arg1: i32) -> (i32, i32) {
    %c0_i32 = arith.constant 0 : i32
    %c0_i32_0 = arith.constant 0 : i32
    %c0_i32_1 = arith.constant 0 : i32
    return %c0_i32, %c0_i32_0 : i32, i32
  }
  func.func @transform_3(%arg0: i32, %arg1: i32) -> (i32, i32) {
    %c0_i32 = arith.constant 0 : i32
    %c0_i32_0 = arith.constant 0 : i32
    return %c0_i32, %arg1 : i32, i32
  }
  func.func @transform_4(%arg0: i32, %arg1: i32) -> (i32, i32) {
    %c0_i32 = arith.constant 0 : i32
    %c0_i32_0 = arith.constant 0 : i32
    return %c0_i32, %arg1 : i32, i32
  }
  func.func @transform_5(%arg0: i32, %arg1: i32) -> (i32, i32) {
    %c0_i32 = arith.constant 0 : i32
    %c0_i32_0 = arith.constant 0 : i32
    return %arg1, %c0_i32 : i32, i32
  }
  func.func @transform_6(%arg0: i32, %arg1: i32) -> (i32, i32) {
    %c0_i32 = arith.constant 0 : i32
    %c0_i32_0 = arith.constant 0 : i32
    %c0_i32_1 = arith.constant 0 : i32
    return %c0_i32, %c0_i32_0 : i32, i32
  }
  func.func @transform_7(%arg0: i32, %arg1: i32) -> (i32, i32) {
    %c0_i32 = arith.constant 0 : i32
    %c0_i32_0 = arith.constant 0 : i32
    return %arg0, %c0_i32 : i32, i32
  }
}

</mosaic_0001>

<llo_original>
// kernel: tpu_custom_call.1
$region0: #{tpu_custom_call.1}
  #allocation0 [shape = 'u32[]', space=smem, size = 0x4, offset = 0x4, fixed_abs, tag = 'smem constant byte address 0x4 - core index']
  #allocation1 [shape = 'u32[72,128]{1,0:T(1,128)}', space=vmem, size = 0x9000, scoped, tag = 'internal scratch']
  #allocation2 [shape = 'f32[16,32]{1,0:T(8,128)}', space=vmem, size = 0x2000, scoped, tag = 'scratch operand']
  #allocation3 [shape = 'f32[16,32]{1,0:T(8,128)}', space=vmem, size = 0x2000, scoped, tag = 'scratch operand']
  %s0 = inlined_call_operand.vmem [shape: f32[16,32], index: 0, kind: input, shape index: {}]
  %s1 = inlined_call_operand.vmem [shape: f32[1,32], index: 1, kind: input, shape index: {}]
  %s2 = inlined_call_operand.vmem [shape: f32[1,32], index: 2, kind: input, shape index: {}]
  %s3 = inlined_call_operand.vmem [shape: f32[32,64], index: 3, kind: input, shape index: {}]
  %s4 = inlined_call_operand.vmem [shape: f32[1,64], index: 4, kind: input, shape index: {}]
  %s5 = inlined_call_operand.vmem [shape: f32[64,32], index: 5, kind: input, shape index: {}]
  %s6 = inlined_call_operand.vmem [shape: f32[1,32], index: 6, kind: input, shape index: {}]
  %s7 = inlined_call_operand.hbm [shape: f32[16,32], index: 7, kind: output, shape index: {}]
  %s8 = sld [smem:[#allocation0]]
  $region46: #{tpu_custom_call.1} parent=0
    _
  %s10 = ssub.s32 1, %s8
  %s11 = scalar_select 0, %s10, %s8
  $region1: #{tpu_custom_call.1} parent=0
    #allocation4 [shape = 'u8[8192]{0}', space=vmem, size = 0x2000, scoped, tag = 'output window, operand 0, single buffered']
    #allocation5 [shape = 's32[1]{0}', space=sflag, size = 0x4, scoped, tag = 'scoped memory for tpu_custom_call.1']
    %12 = vsyncpa [#allocation5], 0
    // Predicated region
    $region2: #{tpu_custom_call.1} parent=1 // pred_check
      _
    $region3: #{tpu_custom_call.1} parent=1 // pred_check_branch
      %14 = sbr.rel (0) target = $region5
    $region4: #{tpu_custom_call.1} parent=1 // pred_region
      _
    $region5: #{tpu_custom_call.1} parent=1 // pred_fallthru
      _
    // Predicated region
    $region6: #{tpu_custom_call.1} parent=1 // pred_check
      _
    $region7: #{tpu_custom_call.1} parent=1 // pred_check_branch
      %16 = sbr.rel (0) target = $region9
    $region8: #{tpu_custom_call.1} parent=1 // pred_region
      _
    $region9: #{tpu_custom_call.1} parent=1 // pred_fallthru
      _
    // Predicated region
    $region10: #{tpu_custom_call.1} parent=1 // pred_check
      _
    $region11: #{tpu_custom_call.1} parent=1 // pred_check_branch
      %18 = sbr.rel (0) target = $region13
    $region12: #{tpu_custom_call.1} parent=1 // pred_region
      _
    $region13: #{tpu_custom_call.1} parent=1 // pred_fallthru
      _
    // Predicated region
    $region14: #{tpu_custom_call.1} parent=1 // pred_check
      _
    $region15: #{tpu_custom_call.1} parent=1 // pred_check_branch
      %20 = sbr.rel (0) target = $region17
    $region16: #{tpu_custom_call.1} parent=1 // pred_region
      _
    $region17: #{tpu_custom_call.1} parent=1 // pred_fallthru
      _
    // Predicated region
    $region18: #{tpu_custom_call.1} parent=1 // pred_check
      _
    $region19: #{tpu_custom_call.1} parent=1 // pred_check_branch
      %22 = sbr.rel (0) target = $region21
    $region20: #{tpu_custom_call.1} parent=1 // pred_region
      _
    $region21: #{tpu_custom_call.1} parent=1 // pred_fallthru
      _
    // Predicated region
    $region22: #{tpu_custom_call.1} parent=1 // pred_check
      _
    $region23: #{tpu_custom_call.1} parent=1 // pred_check_branch
      %24 = sbr.rel (0) target = $region25
    $region24: #{tpu_custom_call.1} parent=1 // pred_region
      _
    $region25: #{tpu_custom_call.1} parent=1 // pred_fallthru
      _
    // Predicated region
    $region26: #{tpu_custom_call.1} parent=1 // pred_check
      _
    $region27: #{tpu_custom_call.1} parent=1 // pred_check_branch
      %26 = sbr.rel (0) target = $region29
    $region28: #{tpu_custom_call.1} parent=1 // pred_region
      _
    $region29: #{tpu_custom_call.1} parent=1 // pred_fallthru
      _
    %p27 = scmp.eq.s32.totalorder 0, 0
    // Predicated region
    $region30: #{tpu_custom_call.1} parent=1 // pred_check
      %p28 = pneg %p27
    $region31: #{tpu_custom_call.1} parent=1 // pred_check_branch
      %30 = sbr.rel (%p28) target = $region33
    $region32: #{tpu_custom_call.1} parent=1 // pred_region
      %v31 = vld [vmem:[%s0] sm:$0xff]
      %v32 = vld [vmem:[%s0 + $0x8] sm:$0xff]
      %v33 = vld [vmem:[%s1] sm:$0x1]
      %v34 = vld [vmem:[%s2] sm:$0x1]
      %vm35 = vcmask 261120
      %v36 = vsel %vm35, %v31, 0.0
      %37 = vadd.xlane.f32.xlu0 %v36
      %v38 = vpop.xlane.xlu0 %37
      %v39 = vsel %vm35, %v32, 0.0
      %40 = vadd.xlane.f32.xlu0 %v39
      %v41 = vpop.xlane.xlu0 %40
      %v42 = vrcp.pop 32.0
      %v43 = vmul.f32 32.0, %v42
      %v44 = vsub.f32 1.0, %v43
      %v45 = vmul.f32 %v42, %v44
      %v46 = vadd.f32 %v42, %v45
      %vm47 = vweird.f32 %v42
      %v48 = vsel %vm47, %v42, %v46
      %v49 = vmul.f32 %v38, %v48
      %v50 = vmul.f32 %v41, %v48
      %v51 = vmul.f32 %v31, %v31
      %v52 = vmul.f32 %v32, %v32
      %v53 = vsel %vm35, %v51, 0.0
      %54 = vadd.xlane.f32.xlu0 %v53
      %v55 = vpop.xlane.xlu0 %54
      %v56 = vsel %vm35, %v52, 0.0
      %57 = vadd.xlane.f32.xlu0 %v56
      %v58 = vpop.xlane.xlu0 %57
      %v59 = vmul.f32 %v55, %v48
      %v60 = vmul.f32 %v58, %v48
      %v61 = vmul.f32 %v49, %v49
      %v62 = vmul.f32 %v50, %v50
      %v63 = vsub.f32 %v59, %v61
      %v64 = vsub.f32 %v60, %v62
      %v65 = vsub.f32 %v31, %v49
      %v66 = vsub.f32 %v32, %v50
      %v67 = vadd.f32 %v63, 1e-05
      %v68 = vadd.f32 %v64, 1e-05
      %v69 = vrsqrt.pop %v67
      %v70 = vmul.f32 %v69, %v67
      %v71 = vmul.f32 %v70, %v69
      %v72 = vmul.f32 0.5, %v71
      %v73 = vsub.f32 1.5, %v72
      %v74 = vmul.f32 %v69, %v73
      %vm75 = vweird.f32 %v67
      %vm76 = vweird.f32 %v69
      %vm77 = vmor %vm75, %vm76
      %v78 = vsel %vm77, %v69, %v74
      %v79 = vrsqrt.pop %v68
      %v80 = vmul.f32 %v79, %v68
      %v81 = vmul.f32 %v80, %v79
      %v82 = vmul.f32 0.5, %v81
      %v83 = vsub.f32 1.5, %v82
      %v84 = vmul.f32 %v79, %v83
      %vm85 = vweird.f32 %v68
      %vm86 = vweird.f32 %v79
      %vm87 = vmor %vm85, %vm86
      %v88 = vsel %vm87, %v79, %v84
      %v89 = vmul.f32 %v65, %v78
      %v90 = vmul.f32 %v66, %v88
      %v92 = vperm.slane %v33, 0
      %v94 = vmul.f32 %v89, %v92
      %v95 = vmul.f32 %v90, %v92
      %v97 = vperm.slane %v34, 0
      %v99 = vadd.f32 %v94, %v97
      %v100 = vadd.f32 %v95, %v97
      %101 = vst.msk [vmem:[#allocation2] sm:$0xff] %vm35, %v99
      %102 = vst.msk [vmem:[#allocation2 + $0x8] sm:$0xff] %vm35, %v100
      %103 = vst.msk [vmem:[#allocation3] sm:$0xff] %vm35, 0.0
      %104 = vst.msk [vmem:[#allocation3 + $0x8] sm:$0xff] %vm35, 0.0
    $region33: #{tpu_custom_call.1} parent=1 // pred_fallthru
      _
    %v105 = vld [vmem:[#allocation2] sm:$0xff]
    %v106 = vld [vmem:[#allocation2 + $0x8] sm:$0xff]
    %v107 = vld [vmem:[%s3] sm:$0xff]
    %v108 = vld [vmem:[%s3 + $0x8] sm:$0xff]
    %v109 = vld [vmem:[%s3 + $0x10] sm:$0xff]
    %v110 = vld [vmem:[%s3 + $0x18] sm:$0xff]
    %v111 = vld [vmem:[%s4] sm:$0x1]
    %v113 = vperm.slane %v111, 0
    %vm115 = vcmask 261120
    %v117 = vsel %vm115, %v105, 0
    %v120 = vsel %vm115, %v106, 0
    %122 = vmatpush.msra.mxu0 0.0
    %123 = vmatpush.msra.mxu0 0.0
    %124 = vmatpush.msra.mxu0 0.0
    %125 = vmatpush.msra.mxu0 0.0
    %126 = vmatpush.msra.mxu0 0.0
    %127 = vmatpush.msra.mxu0 0.0
    %128 = vmatpush.msra.mxu0 0.0
    %129 = vmatpush.msra.mxu0 0.0
    %130 = vmatpush.msra.mxu0 0.0
    %131 = vmatpush.msra.mxu0 0.0
    %132 = vmatpush.msra.mxu0 0.0
    %133 = vmatpush.msra.mxu0 0.0
    %134 = vmatpush.msra.mxu0 %v110
    %135 = vmatpush.msra.mxu0 %v109
    %136 = vmatpush.msra.mxu0 %v108
    %137 = vmatpush.msra.mxu0 %v107
    %138 = vmatmul.f32.gmra.mxu0 %v117
    %v139 = vpop.f32.mrf.mxu0
    %v140 = vadd.f32 %v113, %v139
    %141 = vmatmul.f32.gmra.mxu0 %v120
    %v142 = vpop.f32.mrf.mxu0
    %v143 = vadd.f32 %v113, %v142
    %144 = vdwg.mxu0
    %v145 = vmul.f32 %v140, 0.5
    %v146 = vmul.f32 %v143, 0.5
    %v147 = vmul.f32 %v140, 0.70710677
    %v148 = vmul.f32 %v143, 0.70710677
    %v149 = vand.u32 2147483647, %v147
    %v150 = vand.u32 2147483647, %v148
    %v151 = vmul.f32 %v149, 0.3275911
    %v152 = vmul.f32 %v150, 0.3275911
    %v153 = vadd.f32 %v151, 1.0
    %v154 = vadd.f32 %v152, 1.0
    %v155 = vrcp.pop %v153
    %v156 = vmul.f32 %v153, %v155
    %v157 = vsub.f32 1.0, %v156
    %v158 = vmul.f32 %v155, %v157
    %v159 = vadd.f32 %v155, %v158
    %vm160 = vweird.f32 %v153
    %vm161 = vweird.f32 %v155
    %vm162 = vmor %vm160, %vm161
    %v163 = vsel %vm162, %v155, %v159
    %v164 = vand.u32 2147483647, %v153
    %vm165 = vcmp.eq.f32.partialorder %v164, 8.507059e+37
    %v166 = vand.u32 %v153, 2147483648
    %v167 = vor.u32 1.1754944e-38, %v166
    %v168 = vsel %vm165, %v167, %v163
    %v169 = vmul.f32 1.0, %v168
    %v170 = vrcp.pop %v154
    %v171 = vmul.f32 %v154, %v170
    %v172 = vsub.f32 1.0, %v171
    %v173 = vmul.f32 %v170, %v172
    %v174 = vadd.f32 %v170, %v173
    %vm175 = vweird.f32 %v154
    %vm176 = vweird.f32 %v170
    %vm177 = vmor %vm175, %vm176
    %v178 = vsel %vm177, %v170, %v174
    %v179 = vand.u32 2147483647, %v154
    %vm180 = vcmp.eq.f32.partialorder %v179, 8.507059e+37
    %v181 = vand.u32 %v154, 2147483648
    %v182 = vor.u32 1.1754944e-38, %v181
    %v183 = vsel %vm180, %v182, %v178
    %v184 = vmul.f32 1.0, %v183
    %v185 = vmul.f32 %v169, 1.0614054
    %v186 = vmul.f32 %v184, 1.0614054
    %v187 = vadd.f32 %v185, -1.4531521
    %v188 = vadd.f32 %v186, -1.4531521
    %v189 = vmul.f32 %v187, %v169
    %v190 = vmul.f32 %v188, %v184
    %v191 = vadd.f32 %v189, 1.4214138
    %v192 = vadd.f32 %v190, 1.4214138
    %v193 = vmul.f32 %v191, %v169
    %v194 = vmul.f32 %v192, %v184
    %v195 = vadd.f32 %v193, -0.28449672
    %v196 = vadd.f32 %v194, -0.28449672
    %v197 = vmul.f32 %v195, %v169
    %v198 = vmul.f32 %v196, %v184
    %v199 = vadd.f32 %v197, 0.2548296
    %v200 = vadd.f32 %v198, 0.2548296
    %v201 = vmul.f32 %v199, %v169
    %v202 = vmul.f32 %v200, %v184
    %v203 = vsub.f32 0.0, %v149
    %v204 = vsub.f32 0.0, %v150
    %v205 = vmul.f32 %v203, %v149
    %v206 = vmul.f32 %v204, %v150
    %v207 = vmul.f32 %v205, 1.442695
    %v208 = vpow.pop %v207
    %v209 = vmul.f32 %v206, 1.442695
    %v210 = vpow.pop %v209
    %v211 = vmul.f32 %v201, %v208
    %v212 = vmul.f32 %v202, %v210
    %v213 = vsub.f32 1.0, %v211
    %v214 = vsub.f32 1.0, %v212
    %vm215 = vcmp.ge.f32.partialorder %v147, 0.0
    %vm216 = vcmp.ge.f32.partialorder %v148, 0.0
    %v217 = vsub.f32 0.0, %v213
    %v218 = vsub.f32 0.0, %v214
    %v219 = vsel %vm215, %v213, %v217
    %v220 = vsel %vm216, %v214, %v218
    %v221 = vadd.f32 %v219, 1.0
    %v222 = vadd.f32 %v220, 1.0
    %v223 = vmul.f32 %v145, %v221
    %v224 = vmul.f32 %v146, %v222
    %v225 = vld [vmem:[#allocation3] sm:$0xff]
    %v226 = vld [vmem:[#allocation3 + $0x8] sm:$0xff]
    %v227 = vld [vmem:[%s5] sm:$0xff]
    %v228 = vld [vmem:[%s5 + $0x8] sm:$0xff]
    %v229 = vld [vmem:[%s5 + $0x10] sm:$0xff]
    %v230 = vld [vmem:[%s5 + $0x18] sm:$0xff]
    %v231 = vld [vmem:[%s5 + $0x20] sm:$0xff]
    %v232 = vld [vmem:[%s5 + $0x28] sm:$0xff]
    %v233 = vld [vmem:[%s5 + $0x30] sm:$0xff]
    %v234 = vld [vmem:[%s5 + $0x38] sm:$0xff]
    %vm235 = vcmask 523264
    %v237 = vsel %vm235, %v223, 0
    %v240 = vsel %vm235, %v224, 0
    %242 = vmatpush.msra.mxu0 0.0
    %243 = vmatpush.msra.mxu0 0.0
    %244 = vmatpush.msra.mxu0 0.0
    %245 = vmatpush.msra.mxu0 0.0
    %246 = vmatpush.msra.mxu0 0.0
    %247 = vmatpush.msra.mxu0 0.0
    %248 = vmatpush.msra.mxu0 0.0
    %249 = vmatpush.msra.mxu0 0.0
    %250 = vmatpush.msra.mxu0 %v234
    %251 = vmatpush.msra.mxu0 %v233
    %252 = vmatpush.msra.mxu0 %v232
    %253 = vmatpush.msra.mxu0 %v231
    %254 = vmatpush.msra.mxu0 %v230
    %255 = vmatpush.msra.mxu0 %v229
    %256 = vmatpush.msra.mxu0 %v228
    %257 = vmatpush.msra.mxu0 %v227
    %258 = vmatmul.f32.gmra.mxu0 %v237
    %v259 = vpop.f32.mrf.mxu0
    %v260 = vadd.f32 0.0, %v259
    %261 = vmatmul.f32.gmra.mxu0 %v240
    %v262 = vpop.f32.mrf.mxu0
    %v263 = vadd.f32 0.0, %v262
    %264 = vdwg.mxu0
    %v265 = vadd.f32 %v225, %v260
    %v266 = vadd.f32 %v226, %v263
    %267 = vst.msk [vmem:[#allocation3] sm:$0xff] %vm115, %v265
    %268 = vst.msk [vmem:[#allocation3 + $0x8] sm:$0xff] %vm115, %v266
    // Predicated region
    $region34: #{tpu_custom_call.1} parent=1 // pred_check
      %p269 = pneg %p27
    $region35: #{tpu_custom_call.1} parent=1 // pred_check_branch
      %271 = sbr.rel (%p269) target = $region37
    $region36: #{tpu_custom_call.1} parent=1 // pred_region
      %v272 = vld [vmem:[#allocation3] sm:$0xff]
      %v273 = vld [vmem:[#allocation3 + $0x8] sm:$0xff]
      %v274 = vld [vmem:[%s6] sm:$0x1]
      %v276 = vperm.slane %v274, 0
      %v278 = vadd.f32 %v272, %v276
      %v279 = vadd.f32 %v273, %v276
      %280 = vst.msk [vmem:[#allocation4] sm:$0xff] %vm115, %v278
      %281 = vst.msk [vmem:[#allocation4 + $0x8] sm:$0xff] %vm115, %v279
    $region37: #{tpu_custom_call.1} parent=1 // pred_fallthru
      _
    // Predicated region
    $region38: #{tpu_custom_call.1} parent=1 // pred_check
      _
    $region39: #{tpu_custom_call.1} parent=1 // pred_check_branch
      %283 = sbr.rel (0) target = $region41
    $region40: #{tpu_custom_call.1} parent=1 // pred_region
      %285 = vsyncadd [#allocation5], 0
      %s286 = sshll.u32 [#allocation4], 4
      %s287 = int_to_ptr.vmem [resolvable:$true] %s286
      %s288 = sshll.u32 %s7, 4
      %s289 = int_to_ptr.hbm [resolvable:$true] %s288
      %294 = dma.vmem_to_hbm [thread:$0]  %s287, 256, %s289, [#allocation5], 128, 128, 8
    $region41: #{tpu_custom_call.1} parent=1 // pred_fallthru
      _
    // Predicated region
    $region42: #{tpu_custom_call.1} parent=1 // pred_check
      _
    $region43: #{tpu_custom_call.1} parent=1 // pred_check_branch
      %296 = sbr.rel (0) target = $region45
    $region44: #{tpu_custom_call.1} parent=1 // pred_region
      %298 = dma.done [#allocation5], 256
    $region45: #{tpu_custom_call.1} parent=1 // pred_fallthru
      _
    %299 = vsyncpa [#allocation5], 1

</llo_original>
